<compile_context>
chip_gen: v6e
topology: v6e:2x2x1
jax: 0.10.0
libtpu: 0.0.40
codegen_flags: <defaults>
</compile_context>

<pallas_src>
import math

import jax
import jax.numpy as jnp
from jax import lax
from jax.experimental import pallas as pl
from jax.experimental.pallas import tpu as pltpu

# ---- model dims (from the PyTorch script) ----
LETTER = [c for c in 'SE?abcdefghijklmnopqrstuvwxyz']
TARGET_N_VOCAB = len(LETTER)   # 29
ENC_HID_DIM = 17
DEC_HID_DIM = 19
EMB_DIM = 16                   # emb_dim constructor arg (chosen small)
D_ENC = 2 * ENC_HID_DIM        # 34 (bidirectional encoder output dim)

HP = 128                       # lane-padded feature width (one vreg of lanes)


# ----------------------------------------------------------------------------
# Kernel: one batch element per grid step; full T-step recurrence in-kernel.
# ----------------------------------------------------------------------------
def decoder_kernel(eW_ref,     # (1, T, 4*HP)  hoisted emb-side terms (+ biases): [r | z | n_in | fc]
                   enc_ref,    # (1, L, HP)    encoder outputs (lane-padded)
                   s0_ref,     # (1, 1, HP)    initial hidden (lane-padded)
                   wq_ref,     # (HP, HP)      Wq / sqrt(D)
                   whc_ref,    # (2*HP, 5*HP)  [h | c] K-fused slab: r | z | n(c) | n(h) | fc(c)
                   whn_ref,    # (HP, HP)      Wfc_h (applied to the NEW hidden)
                   bhn_ref,    # (8, HP)       row 0: b_hh_n (gated by r)
                   pred_ref,   # out: (1, T, HP) per-step logits (VMEM-resident until final DMA)
                   hout_ref):  # out: (1, 1, HP) final hidden state
    T = eW_ref.shape[1]

    # ---- loop-invariant loads (hoisted once per invocation) ----
    enc = enc_ref[0]             # (L, HP)
    b_hn = bhn_ref[0:1, :]       # (1, HP)
    wq = wq_ref[...]             # (HP, HP)
    whc = whc_ref[...]           # (2*HP, 5*HP)
    whn = whn_ref[...]           # (HP, HP)
    h0 = s0_ref[0]               # (1, HP)

    def step(t, h):
        e_t = eW_ref[0, pl.ds(t, 1), :]                                     # (1, 4*HP)

        # ---- attention: q = h @ (Wq/sqrt(D)); scores/context on VPU/XLU ----
        q = jnp.dot(h, wq, preferred_element_type=jnp.float32)             # (1, HP)
        scores = jnp.sum(q * enc, axis=-1, keepdims=True)                  # (L, 1) lane reduce
        m = jnp.max(scores, axis=0, keepdims=True)                         # (1, 1)
        p = jnp.exp(scores - m)                                            # (L, 1)
        attn = p * pl.reciprocal(jnp.sum(p, axis=0, keepdims=True), approx=True)
        c = jnp.sum(attn * enc, axis=0, keepdims=True)                     # (1, HP) sublane reduce

        # ---- K-fused [h | c] slab (K=256): r(h+c) | z(h+c) | n(c) | n(h) | fc(c) ----
        hc = jnp.concatenate([h, c], axis=-1)                              # (1, 2*HP)
        g = jnp.dot(hc, whc, preferred_element_type=jnp.float32)           # (1, 5*HP)

        # ---- GRU single step (biases for r/z/n_in/fc already folded into e_t) ----
        r = jax.nn.sigmoid(e_t[:, 0:HP] + g[:, 0:HP])
        z = jax.nn.sigmoid(e_t[:, HP:2 * HP] + g[:, HP:2 * HP])
        n = jnp.tanh(e_t[:, 2 * HP:3 * HP] + g[:, 2 * HP:3 * HP]
                     + r * (g[:, 3 * HP:4 * HP] + b_hn))
        h_new = (1.0 - z) * n + z * h                                      # (1, HP)

        # ---- fc_out on cat([dec_output, c, embedded]) (split-matmul form) ----
        pred = (jnp.dot(h_new, whn, preferred_element_type=jnp.float32)
                + g[:, 4 * HP:5 * HP] + e_t[:, 3 * HP:4 * HP])             # (1, HP)
        pred_ref[0, pl.ds(t, 1), :] = pred
        return h_new

    h_final = lax.fori_loop(0, T, step, h0, unroll=(T <= 16))
    hout_ref[0] = h_final


# ----------------------------------------------------------------------------
# Parameters: "logical" params mirror the PyTorch layout (transposed);
# pack_params builds the lane-padded slabs consumed by the kernel/wrapper.
# ----------------------------------------------------------------------------
def make_params(key):
    V, E, H, D = TARGET_N_VOCAB, EMB_DIM, DEC_HID_DIM, D_ENC
    ks = jax.random.split(key, 9)
    scale = 0.1
    return {
        "emb_table": scale * jax.random.normal(ks[0], (V, E), jnp.float32),
        # tranform_s_for_attention: Linear(H -> D), no bias, stored transposed
        "w_q": scale * jax.random.normal(ks[1], (H, D), jnp.float32),
        # GRU weights, stored transposed; input = [embedded | c]; gates [r | z | n]
        "w_ih": scale * jax.random.normal(ks[2], (E + D, 3 * H), jnp.float32),
        "w_hh": scale * jax.random.normal(ks[3], (H, 3 * H), jnp.float32),
        "b_ih": scale * jax.random.normal(ks[4], (3 * H,), jnp.float32),
        "b_hh": scale * jax.random.normal(ks[5], (3 * H,), jnp.float32),
        # fc_out, stored transposed; input = [dec_output | c | embedded]
        "w_fc": scale * jax.random.normal(ks[6], (H + D + E, V), jnp.float32),
        "b_fc": scale * jax.random.normal(ks[7], (V,), jnp.float32),
    }


def pack_params(p):
    V, E, H, D = TARGET_N_VOCAB, EMB_DIM, DEC_HID_DIM, D_ENC

    # Embedding table, lane-padded (used only in the wrapper-side hoisted precompute;
    # XLA's gather clamps indices, so no unchecked in-kernel VMEM gather remains).
    emb_p = jnp.zeros((V, HP), jnp.float32).at[:, :E].set(p["emb_table"])

    # W_e: embedded multiplies [Wih_e_r | Wih_e_z | Wih_e_n | Wfc_e]
    W_e = jnp.zeros((HP, 4 * HP), jnp.float32)
    for g in range(3):
        W_e = W_e.at[:E, g * HP:g * HP + H].set(p["w_ih"][:E, g * H:(g + 1) * H])
    W_e = W_e.at[:E, 3 * HP:3 * HP + V].set(p["w_fc"][H + D:H + D + E, :])

    # b_e: biases folded into the hoisted embedding-side precompute
    #   [b_ih_r + b_hh_r | b_ih_z + b_hh_z | b_ih_n | b_fc]
    b_e = jnp.zeros((4 * HP,), jnp.float32)
    b_e = b_e.at[0 * HP:0 * HP + H].set(p["b_ih"][:H] + p["b_hh"][:H])
    b_e = b_e.at[1 * HP:1 * HP + H].set(p["b_ih"][H:2 * H] + p["b_hh"][H:2 * H])
    b_e = b_e.at[2 * HP:2 * HP + H].set(p["b_ih"][2 * H:3 * H])
    b_e = b_e.at[3 * HP:3 * HP + V].set(p["b_fc"])

    # W_q: attention query projection with 1/sqrt(D) folded in
    W_q = jnp.zeros((HP, HP), jnp.float32).at[:H, :D].set(p["w_q"] / math.sqrt(D))

    # W_hc: [h | c] K-fused slab; column blocks:
    #   0: Whh_r + Wih_c_r   1: Whh_z + Wih_c_z   2: Wih_c_n   3: Whh_n   4: Wfc_c
    W_hc = jnp.zeros((2 * HP, 5 * HP), jnp.float32)
    # h rows (0:H)
    W_hc = W_hc.at[:H, 0 * HP:0 * HP + H].set(p["w_hh"][:, 0:H])
    W_hc = W_hc.at[:H, 1 * HP:1 * HP + H].set(p["w_hh"][:, H:2 * H])
    W_hc = W_hc.at[:H, 3 * HP:3 * HP + H].set(p["w_hh"][:, 2 * H:3 * H])
    # c rows (HP:HP+D)
    W_hc = W_hc.at[HP:HP + D, 0 * HP:0 * HP + H].set(p["w_ih"][E:E + D, 0:H])
    W_hc = W_hc.at[HP:HP + D, 1 * HP:1 * HP + H].set(p["w_ih"][E:E + D, H:2 * H])
    W_hc = W_hc.at[HP:HP + D, 2 * HP:2 * HP + H].set(p["w_ih"][E:E + D, 2 * H:3 * H])
    W_hc = W_hc.at[HP:HP + D, 4 * HP:4 * HP + V].set(p["w_fc"][H:H + D, :])

    # W_hn: NEW hidden state multiplies Wfc_h
    W_hn = jnp.zeros((HP, HP), jnp.float32).at[:H, :V].set(p["w_fc"][:H, :])

    # b_hn: hidden-side n-gate bias (multiplied by r), sublane-padded slab
    B_hn = jnp.zeros((8, HP), jnp.float32).at[0, :H].set(p["b_hh"][2 * H:3 * H])

    return {"emb_p": emb_p, "W_e": W_e, "b_e": b_e, "W_q": W_q,
            "W_hc": W_hc, "W_hn": W_hn, "B_hn": B_hn}


# ----------------------------------------------------------------------------
# Wrappers
# ----------------------------------------------------------------------------
def _decoder_decode_impl(packed, tokens, s, enc_output):
    """Fused multi-step decode: tokens (T,B) int32, s (B,H), enc_output (B,L,D)."""
    T, B = tokens.shape
    L = enc_output.shape[1]
    V, H, D = TARGET_N_VOCAB, DEC_HID_DIM, D_ENC

    # ---- hoisted embedding-side precompute (token-only; batched over T*B) ----
    emb_all = packed["emb_p"][tokens]                                     # (T, B, HP)
    eW_all = jnp.dot(emb_all, packed["W_e"],
                     precision=jax.lax.Precision.HIGHEST) + packed["b_e"]  # (T, B, 4*HP)
    eW_bt = jnp.swapaxes(eW_all, 0, 1)                                    # (B, T, 4*HP)

    s_p = jnp.zeros((B, 1, HP), jnp.float32).at[:, 0, :H].set(s)
    enc_p = jnp.zeros((B, L, HP), jnp.float32).at[:, :, :D].set(enc_output)

    const2 = lambda b: (0, 0)

    grid_spec = pltpu.PrefetchScalarGridSpec(
        num_scalar_prefetch=0,
        grid=(B,),                                              # per-batch recurrences (parallel)
        in_specs=[
            pl.BlockSpec((1, T, 4 * HP), lambda b: (b, 0, 0)),  # hoisted emb terms
            pl.BlockSpec((1, L, HP), lambda b: (b, 0, 0)),      # enc
            pl.BlockSpec((1, 1, HP), lambda b: (b, 0, 0)),      # initial hidden
            pl.BlockSpec((HP, HP), const2),                     # W_q   (resident)
            pl.BlockSpec((2 * HP, 5 * HP), const2),             # W_hc  (resident)
            pl.BlockSpec((HP, HP), const2),                     # W_hn  (resident)
            pl.BlockSpec((8, HP), const2),                      # b_hn  (resident)
        ],
        out_specs=(
            pl.BlockSpec((1, T, HP), lambda b: (b, 0, 0)),      # per-step logits (lane-dense)
            pl.BlockSpec((1, 1, HP), lambda b: (b, 0, 0)),      # final hidden
        ),
    )

    flops = B * T * (24 * HP * HP + 4 * L * HP)
    transc = B * T * (3 * HP + L + 1)
    bytes_acc = 4 * (B * T * 4 * HP + B * L * HP + B * HP
                     + 2 * HP * HP + 2 * HP * 5 * HP + 8 * HP
                     + B * T * HP + B * HP)
    cost = pl.CostEstimate(flops=flops, transcendentals=transc, bytes_accessed=bytes_acc)

    preds_bt, h_b = pl.pallas_call(
        decoder_kernel,
        grid_spec=grid_spec,
        out_shape=(jax.ShapeDtypeStruct((B, T, HP), jnp.float32),
                   jax.ShapeDtypeStruct((B, 1, HP), jnp.float32)),
        compiler_params=pltpu.CompilerParams(dimension_semantics=("parallel",)),
        cost_estimate=cost,
    )(eW_bt, enc_p, s_p, packed["W_q"], packed["W_hc"], packed["W_hn"], packed["B_hn"])

    preds = jnp.swapaxes(preds_bt, 0, 1)[:, :, :V]                        # (T, B, V)
    return preds, h_b[:, 0, :H]


decoder_decode = jax.jit(_decoder_decode_impl)


def decoder_forward(packed, dec_input, s, enc_output):
    """Single decode step -- exact semantics of the PyTorch Decoder.forward."""
    preds, h_new = decoder_decode(packed, dec_input[None, :], s, enc_output)
    return preds[0], h_new


# ----------------------------------------------------------------------------
# Pure-JAX reference (mirrors the PyTorch forward exactly)
# ----------------------------------------------------------------------------
def decoder_step_ref(p, tok, h, enc):
    H = DEC_HID_DIM
    emb = p["emb_table"][tok]                                          # (B, E)  (dropout = identity)
    q = h @ p["w_q"]                                                   # (B, D)
    scores = jnp.einsum("bd,bld->bl", q, enc) / math.sqrt(enc.shape[-1])
    attn = jax.nn.softmax(scores, axis=-1)
    c = jnp.einsum("bl,bld->bd", attn, enc)                            # (B, D)
    x = jnp.concatenate([emb, c], axis=-1)
    gi = x @ p["w_ih"] + p["b_ih"]
    gh = h @ p["w_hh"] + p["b_hh"]
    r = jax.nn.sigmoid(gi[:, :H] + gh[:, :H])
    z = jax.nn.sigmoid(gi[:, H:2 * H] + gh[:, H:2 * H])
    n = jnp.tanh(gi[:, 2 * H:] + r * gh[:, 2 * H:])
    h_new = (1.0 - z) * n + z * h
    pred = jnp.concatenate([h_new, c, emb], axis=-1) @ p["w_fc"] + p["b_fc"]
    return pred, h_new


if __name__ == "__main__":
    key = jax.random.PRNGKey(0)
    kp, k1, k2, k3 = jax.random.split(key, 4)

    B = 2          # batch
    L = 8          # src_len (encoder sequence length)
    T = 4          # number of decode steps for the fused-loop test

    params = make_params(kp)
    packed = pack_params(params)

    tokens = jax.random.randint(k1, (T, B), 0, TARGET_N_VOCAB, dtype=jnp.int32)
    s0 = jax.random.normal(k2, (B, DEC_HID_DIM), jnp.float32)
    enc_output = jax.random.normal(k3, (B, L, D_ENC), jnp.float32)

    # ---- single step (module-exact forward) ----
    pred1, h1 = jax.block_until_ready(decoder_forward(packed, tokens[0], s0, enc_output))
    pred1_ref, h1_ref = decoder_step_ref(params, tokens[0], s0, enc_output)
    assert pred1.shape == (B, TARGET_N_VOCAB) and h1.shape == (B, DEC_HID_DIM)
    assert jnp.allclose(pred1, pred1_ref, rtol=2e-3, atol=2e-3)
    assert jnp.allclose(h1, h1_ref, rtol=2e-3, atol=2e-3)

    # ---- fused multi-step decode (full T-step recurrence inside one pallas_call) ----
    preds, hT = jax.block_until_ready(decoder_decode(packed, tokens, s0, enc_output))
    h = s0
    preds_ref = []
    for t in range(T):
        p_t, h = decoder_step_ref(params, tokens[t], h, enc_output)
        preds_ref.append(p_t)
    preds_ref = jnp.stack(preds_ref, axis=0)
    assert preds.shape == (T, B, TARGET_N_VOCAB) and hT.shape == (B, DEC_HID_DIM)
    assert jnp.allclose(preds, preds_ref, rtol=2e-3, atol=2e-3)
    assert jnp.allclose(hT, h, rtol=2e-3, atol=2e-3)

    print("KERNEL_OK")
</pallas_src>

<mosaic_0001>
module attributes {stable_mosaic.version = 11 : i64} {
  func.func @decoder_kernel(%arg0: i32, %arg1: memref<1x1x512xf32, #tpu.memory_space<vmem>>, %arg2: memref<1x8x128xf32, #tpu.memory_space<vmem>>, %arg3: memref<1x1x128xf32, #tpu.memory_space<vmem>>, %arg4: memref<128x128xf32, #tpu.memory_space<vmem>>, %arg5: memref<256x640xf32, #tpu.memory_space<vmem>>, %arg6: memref<128x128xf32, #tpu.memory_space<vmem>>, %arg7: memref<8x128xf32, #tpu.memory_space<vmem>>, %arg8: memref<1x1x128xf32, #tpu.memory_space<vmem>>, %arg9: memref<1x1x128xf32, #tpu.memory_space<vmem>>) attributes {dimension_semantics = [#tpu.dimension_semantics<parallel>], iteration_bounds = array<i64: 2>, scalar_prefetch = 0 : i64, scratch_operands = 0 : i64, tpu.core_type = #tpu.core_type<tc>, window_params = [{transform_indices = @transform_0, window_bounds = array<i64: 1, 1, 512>}, {transform_indices = @transform_1, window_bounds = array<i64: 1, 8, 128>}, {transform_indices = @transform_2, window_bounds = array<i64: 1, 1, 128>}, {pipeline_mode = #tpu.pipeline_mode<synchronous>, transform_indices = @transform_3, window_bounds = array<i64: 128, 128>}, {pipeline_mode = #tpu.pipeline_mode<synchronous>, transform_indices = @transform_4, window_bounds = array<i64: 256, 640>}, {pipeline_mode = #tpu.pipeline_mode<synchronous>, transform_indices = @transform_5, window_bounds = array<i64: 128, 128>}, {pipeline_mode = #tpu.pipeline_mode<synchronous>, transform_indices = @transform_6, window_bounds = array<i64: 8, 128>}, {transform_indices = @transform_7, window_bounds = array<i64: 1, 1, 128>}, {transform_indices = @transform_8, window_bounds = array<i64: 1, 1, 128>}]} {
    %c0 = arith.constant 0 : index
    %c0_0 = arith.constant 0 : index
    %c0_1 = arith.constant 0 : index
    %0 = vector.load %arg2[%c0, %c0_0, %c0_1] : memref<1x8x128xf32, #tpu.memory_space<vmem>>, vector<1x8x128xf32>
    %1 = vector.shape_cast %0 : vector<1x8x128xf32> to vector<8x128xf32>
    %c0_2 = arith.constant 0 : index
    %c0_3 = arith.constant 0 : index
    %2 = vector.load %arg7[%c0_2, %c0_3] : memref<8x128xf32, #tpu.memory_space<vmem>>, vector<1x128xf32>
    %c0_4 = arith.constant 0 : index
    %c0_5 = arith.constant 0 : index
    %3 = vector.load %arg4[%c0_4, %c0_5] : memref<128x128xf32, #tpu.memory_space<vmem>>, vector<128x128xf32>
    %c0_6 = arith.constant 0 : index
    %c0_7 = arith.constant 0 : index
    %4 = vector.load %arg5[%c0_6, %c0_7] : memref<256x640xf32, #tpu.memory_space<vmem>>, vector<256x640xf32>
    %c0_8 = arith.constant 0 : index
    %c0_9 = arith.constant 0 : index
    %5 = vector.load %arg6[%c0_8, %c0_9] : memref<128x128xf32, #tpu.memory_space<vmem>>, vector<128x128xf32>
    %c0_10 = arith.constant 0 : index
    %c0_11 = arith.constant 0 : index
    %c0_12 = arith.constant 0 : index
    %6 = vector.load %arg3[%c0_10, %c0_11, %c0_12] : memref<1x1x128xf32, #tpu.memory_space<vmem>>, vector<1x1x128xf32>
    %7 = vector.shape_cast %6 : vector<1x1x128xf32> to vector<1x128xf32>
    %c0_i32 = arith.constant 0 : i32
    %c0_13 = arith.constant 0 : index
    %8 = arith.index_cast %c0_i32 : i32 to index
    %c0_14 = arith.constant 0 : index
    %9 = vector.load %arg1[%c0_13, %8, %c0_14] : memref<1x1x512xf32, #tpu.memory_space<vmem>>, vector<1x1x512xf32>
    %10 = vector.shape_cast %9 : vector<1x1x512xf32> to vector<1x512xf32>
    %cst = arith.constant dense<0.000000e+00> : vector<1x128xf32>
    %11 = tpu.matmul %7, %3, %cst {dimension_numbers = #tpu.dot_dimension_numbers<[1], [0], [0], [1], [0, 0, 1, 1], [], []>} : vector<1x128xf32>, vector<128x128xf32>, vector<1x128xf32> -> vector<1x128xf32>
    %12 = vector.broadcast %11 : vector<1x128xf32> to vector<8x128xf32>
    %13 = arith.mulf %12, %1 : vector<8x128xf32>
    %cst_15 = arith.constant dense<0.000000e+00> : vector<8xf32>
    %14 = vector.multi_reduction <add>, %13, %cst_15 [1] : vector<8x128xf32> to vector<8xf32>
    %15 = vector.shape_cast %14 : vector<8xf32> to vector<8x1xf32>
    %cst_16 = arith.constant dense<0xFF800000> : vector<1xf32>
    %16 = vector.multi_reduction <maximumf>, %15, %cst_16 [0] : vector<8x1xf32> to vector<1xf32>
    %17 = vector.shape_cast %16 : vector<1xf32> to vector<1x1xf32>
    %18 = vector.broadcast %17 : vector<1x1xf32> to vector<8x1xf32>
    %19 = arith.subf %15, %18 : vector<8x1xf32>
    %20 = math.exp %19 : vector<8x1xf32>
    %cst_17 = arith.constant dense<0.000000e+00> : vector<1xf32>
    %21 = vector.multi_reduction <add>, %20, %cst_17 [0] : vector<8x1xf32> to vector<1xf32>
    %22 = vector.shape_cast %21 : vector<1xf32> to vector<1x1xf32>
    %23 = tpu.reciprocal %22 {approx = true} : vector<1x1xf32> -> vector<1x1xf32>
    %24 = vector.broadcast %23 : vector<1x1xf32> to vector<8x1xf32>
    %25 = arith.mulf %20, %24 : vector<8x1xf32>
    %26 = vector.broadcast %25 : vector<8x1xf32> to vector<8x128xf32>
    %27 = arith.mulf %26, %1 : vector<8x128xf32>
    %cst_18 = arith.constant dense<0.000000e+00> : vector<128xf32>
    %28 = vector.multi_reduction <add>, %27, %cst_18 [0] : vector<8x128xf32> to vector<128xf32>
    %29 = vector.shape_cast %28 : vector<128xf32> to vector<1x128xf32>
    %30 = tpu.concatenate %7, %29 in 1 : vector<1x128xf32>, vector<1x128xf32> -> vector<1x256xf32>
    %cst_19 = arith.constant dense<0.000000e+00> : vector<1x640xf32>
    %31 = tpu.matmul %30, %4, %cst_19 {dimension_numbers = #tpu.dot_dimension_numbers<[1], [0], [0], [1], [0, 0, 1, 1], [], []>} : vector<1x256xf32>, vector<256x640xf32>, vector<1x640xf32> -> vector<1x640xf32>
    %32 = vector.extract_strided_slice %10 {offsets = [0, 0], sizes = [1, 128], strides = [1, 1]} : vector<1x512xf32> to vector<1x128xf32>
    %33 = vector.extract_strided_slice %31 {offsets = [0, 0], sizes = [1, 128], strides = [1, 1]} : vector<1x640xf32> to vector<1x128xf32>
    %34 = arith.addf %32, %33 : vector<1x128xf32>
    %35 = arith.negf %34 : vector<1x128xf32>
    %36 = math.exp %35 : vector<1x128xf32>
    %cst_20 = arith.constant 1.000000e+00 : f32
    %37 = vector.broadcast %cst_20 : f32 to vector<1x128xf32>
    %38 = arith.addf %37, %36 : vector<1x128xf32>
    %39 = arith.divf %37, %38 : vector<1x128xf32>
    %40 = vector.extract_strided_slice %10 {offsets = [0, 128], sizes = [1, 128], strides = [1, 1]} : vector<1x512xf32> to vector<1x128xf32>
    %41 = vector.extract_strided_slice %31 {offsets = [0, 128], sizes = [1, 128], strides = [1, 1]} : vector<1x640xf32> to vector<1x128xf32>
    %42 = arith.addf %40, %41 : vector<1x128xf32>
    %43 = arith.negf %42 : vector<1x128xf32>
    %44 = math.exp %43 : vector<1x128xf32>
    %cst_21 = arith.constant 1.000000e+00 : f32
    %45 = vector.broadcast %cst_21 : f32 to vector<1x128xf32>
    %46 = arith.addf %45, %44 : vector<1x128xf32>
    %47 = arith.divf %45, %46 : vector<1x128xf32>
    %48 = vector.extract_strided_slice %10 {offsets = [0, 256], sizes = [1, 128], strides = [1, 1]} : vector<1x512xf32> to vector<1x128xf32>
    %49 = vector.extract_strided_slice %31 {offsets = [0, 256], sizes = [1, 128], strides = [1, 1]} : vector<1x640xf32> to vector<1x128xf32>
    %50 = arith.addf %48, %49 : vector<1x128xf32>
    %51 = vector.extract_strided_slice %31 {offsets = [0, 384], sizes = [1, 128], strides = [1, 1]} : vector<1x640xf32> to vector<1x128xf32>
    %52 = arith.addf %51, %2 : vector<1x128xf32>
    %53 = arith.mulf %39, %52 : vector<1x128xf32>
    %54 = arith.addf %50, %53 : vector<1x128xf32>
    %55 = math.tanh %54 : vector<1x128xf32>
    %cst_22 = arith.constant 1.000000e+00 : f32
    %56 = vector.broadcast %cst_22 : f32 to vector<1x128xf32>
    %57 = arith.subf %56, %47 : vector<1x128xf32>
    %58 = arith.mulf %57, %55 : vector<1x128xf32>
    %59 = arith.mulf %47, %7 : vector<1x128xf32>
    %60 = arith.addf %58, %59 : vector<1x128xf32>
    %cst_23 = arith.constant dense<0.000000e+00> : vector<1x128xf32>
    %61 = tpu.matmul %60, %5, %cst_23 {dimension_numbers = #tpu.dot_dimension_numbers<[1], [0], [0], [1], [0, 0, 1, 1], [], []>} : vector<1x128xf32>, vector<128x128xf32>, vector<1x128xf32> -> vector<1x128xf32>
    %62 = vector.extract_strided_slice %31 {offsets = [0, 512], sizes = [1, 128], strides = [1, 1]} : vector<1x640xf32> to vector<1x128xf32>
    %63 = arith.addf %61, %62 : vector<1x128xf32>
    %64 = vector.extract_strided_slice %10 {offsets = [0, 384], sizes = [1, 128], strides = [1, 1]} : vector<1x512xf32> to vector<1x128xf32>
    %65 = arith.addf %63, %64 : vector<1x128xf32>
    %c0_24 = arith.constant 0 : index
    %66 = arith.index_cast %c0_i32 : i32 to index
    %c0_25 = arith.constant 0 : index
    %67 = vector.load %arg8[%c0_24, %66, %c0_25] : memref<1x1x128xf32, #tpu.memory_space<vmem>>, vector<1x1x128xf32>
    %68 = vector.shape_cast %67 : vector<1x1x128xf32> to vector<1x128xf32>
    %69 = vector.shape_cast %65 : vector<1x128xf32> to vector<1x1x128xf32>
    tpu.vector_store %arg8[%c0_24, %66, %c0_25], %69 {strides = array<i32>} : memref<1x1x128xf32, #tpu.memory_space<vmem>>, vector<1x1x128xf32>,
    %c1_i32 = arith.constant 1 : i32
    %c0_26 = arith.constant 0 : index
    %c0_27 = arith.constant 0 : index
    %c0_28 = arith.constant 0 : index
    %70 = vector.load %arg9[%c0_26, %c0_27, %c0_28] : memref<1x1x128xf32, #tpu.memory_space<vmem>>, vector<1x1x128xf32>
    %71 = vector.shape_cast %70 : vector<1x1x128xf32> to vector<1x128xf32>
    %72 = vector.shape_cast %60 : vector<1x128xf32> to vector<1x1x128xf32>
    tpu.vector_store %arg9[%c0_26, %c0_27, %c0_28], %72 {strides = array<i32>} : memref<1x1x128xf32, #tpu.memory_space<vmem>>, vector<1x1x128xf32>,
    return
  }
  func.func @transform_0(%arg0: i32) -> (i32, i32, i32) {
    %c0_i32 = arith.constant 0 : i32
    %c0_i32_0 = arith.constant 0 : i32
    %c0_i32_1 = arith.constant 0 : i32
    return %arg0, %c0_i32, %c0_i32_0 : i32, i32, i32
  }
  func.func @transform_1(%arg0: i32) -> (i32, i32, i32) {
    %c0_i32 = arith.constant 0 : i32
    %c0_i32_0 = arith.constant 0 : i32
    %c0_i32_1 = arith.constant 0 : i32
    return %arg0, %c0_i32, %c0_i32_0 : i32, i32, i32
  }
  func.func @transform_2(%arg0: i32) -> (i32, i32, i32) {
    %c0_i32 = arith.constant 0 : i32
    %c0_i32_0 = arith.constant 0 : i32
    %c0_i32_1 = arith.constant 0 : i32
    return %arg0, %c0_i32, %c0_i32_0 : i32, i32, i32
  }
  func.func @transform_3(%arg0: i32) -> (i32, i32) {
    %c0_i32 = arith.constant 0 : i32
    %c0_i32_0 = arith.constant 0 : i32
    %c0_i32_1 = arith.constant 0 : i32
    return %c0_i32, %c0_i32_0 : i32, i32
  }
  func.func @transform_4(%arg0: i32) -> (i32, i32) {
    %c0_i32 = arith.constant 0 : i32
    %c0_i32_0 = arith.constant 0 : i32
    %c0_i32_1 = arith.constant 0 : i32
    return %c0_i32, %c0_i32_0 : i32, i32
  }
  func.func @transform_5(%arg0: i32) -> (i32, i32) {
    %c0_i32 = arith.constant 0 : i32
    %c0_i32_0 = arith.constant 0 : i32
    %c0_i32_1 = arith.constant 0 : i32
    return %c0_i32, %c0_i32_0 : i32, i32
  }
  func.func @transform_6(%arg0: i32) -> (i32, i32) {
    %c0_i32 = arith.constant 0 : i32
    %c0_i32_0 = arith.constant 0 : i32
    %c0_i32_1 = arith.constant 0 : i32
    return %c0_i32, %c0_i32_0 : i32, i32
  }
  func.func @transform_7(%arg0: i32) -> (i32, i32, i32) {
    %c0_i32 = arith.constant 0 : i32
    %c0_i32_0 = arith.constant 0 : i32
    %c0_i32_1 = arith.constant 0 : i32
    return %arg0, %c0_i32, %c0_i32_0 : i32, i32, i32
  }
  func.func @transform_8(%arg0: i32) -> (i32, i32, i32) {
    %c0_i32 = arith.constant 0 : i32
    %c0_i32_0 = arith.constant 0 : i32
    %c0_i32_1 = arith.constant 0 : i32
    return %arg0, %c0_i32, %c0_i32_0 : i32, i32, i32
  }
}

</mosaic_0001>

<llo_original>
// kernel: _decoder_decode_impl.1
$region0: #{_decoder_decode_impl.1}
  #allocation0 [shape = 'u32[]', space=smem, size = 0x4, offset = 0x4, fixed_abs, tag = 'smem constant byte address 0x4 - core index']
  #allocation1 [shape = 'u32[144,128]{1,0:T(1,128)}', space=vmem, size = 0x12000, scoped, tag = 'internal scratch']
  %s0 = inlined_call_operand.vmem [shape: f32[2,1,512], index: 0, kind: input, shape index: {}]
  %s1 = inlined_call_operand.vmem [shape: f32[2,8,128], index: 1, kind: input, shape index: {}]
  %s2 = inlined_call_operand.vmem [shape: f32[2,1,128], index: 2, kind: input, shape index: {}]
  %s3 = inlined_call_operand.vmem [shape: f32[128,128], index: 3, kind: input, shape index: {}]
  %s4 = inlined_call_operand.hbm [shape: f32[256,640], index: 4, kind: input, shape index: {}]
  %s5 = inlined_call_operand.vmem [shape: f32[128,128], index: 5, kind: input, shape index: {}]
  %s6 = inlined_call_operand.vmem [shape: f32[8,128], index: 6, kind: input, shape index: {}]
  %s7 = inlined_call_operand.hbm [shape: f32[2,1,128], index: 7, kind: output, shape index: {0}]
  %s8 = inlined_call_operand.hbm [shape: f32[2,1,128], index: 8, kind: output, shape index: {1}]
  %9 = xla_tuple %s7, %s8
  %s10 = sld [smem:[#allocation0]]
  $region73: #{_decoder_decode_impl.1} parent=0
    _
  %s12 = ssub.s32 1, %s10
  %s13 = scalar_select 0, %s12, %s10
  $region1: #{_decoder_decode_impl.1} parent=0
    #allocation2 [shape = 'u8[655360]{0}', space=vmem, size = 0xa0000, scoped, tag = 'input window, operand 4, single buffered']
    #allocation3 [shape = 's32[2]{0}', space=sflag, size = 0x8, scoped, tag = 'scoped memory for _decoder_decode_impl.1']
    #allocation4 [shape = 's32[2]{0}', space=sflag, size = 0x8, scoped, tag = 'scoped memory for _decoder_decode_impl.1']
    #allocation5 [shape = 'u8[1024]{0}', space=vmem, size = 0x400, scoped, tag = 'output window, operand 0']
    #allocation6 [shape = 'u8[1024]{0}', space=vmem, size = 0x400, scoped, tag = 'output window, operand 1']
    #allocation7 [shape = 's32[2]{0}', space=sflag, size = 0x8, scoped, tag = 'scoped memory for _decoder_decode_impl.1']
    %14 = vsyncpa [#allocation3], 0
    %15 = vsyncpa [#allocation4], 0
    %s16 = scalar_lea.sflag [#allocation4], 1
    %17 = vsyncpa %s16, 0
    %18 = vsyncpa [#allocation7], 0
    %s19 = scalar_lea.sflag [#allocation7], 1
    %20 = vsyncpa %s19, 0
    loop: start=0, step=1, limit=4
    $region2: #{_decoder_decode_impl.1} parent=1 // loop_pre_header
      _
    $region3: #{_decoder_decode_impl.1} parent=1 // loop_header
      %s22 = sphi 0, %s26
      %p23 = scmp.ge.s32.totalorder %s22, 4
      %s32 = sphi 0, %s34
      %s35 = sphi 0, %s32
      %s36 = sphi 0, %s35
      %s52 = sphi 0, %s36
      %s58 = sphi 0, %s60
      %s61 = sphi 0, %s58
      %s62 = sphi 0, %s61
      %s78 = sphi 0, %s62
      %s84 = sphi 0, %s86
      %s87 = sphi 0, %s84
      %s88 = sphi 0, %s87
      %s104 = sphi 0, %s88
      %s108 = sphi 0, %s108
      %s110 = sphi 0, %s108
      %s111 = sphi 0, %s110
      %s125 = sphi 0, %s111
      %s129 = sphi 0, %s129
      %s131 = sphi 0, %s129
      %s132 = sphi 0, %s131
      %s146 = sphi 0, %s132
      %s150 = sphi 0, %s150
      %s152 = sphi 0, %s150
      %s153 = sphi 0, %s152
      %s167 = sphi 0, %s153
      %s171 = sphi 0, %s171
      %s173 = sphi 0, %s171
      %s174 = sphi 0, %s173
      %s188 = sphi 0, %s174
      %s194 = sphi 0, %s196
      %s197 = sphi 0, %s194
      %s198 = sphi 0, %s197
      %s214 = sphi 0, %s198
      %s220 = sphi 0, %s222
      %s223 = sphi 0, %s220
      %s224 = sphi 0, %s223
      %s240 = sphi 0, %s224
    $region4: #{_decoder_decode_impl.1} parent=1 // loop_header_branch
      %25 = sbr.rel (%p23) target = $region8
    $region5: #{_decoder_decode_impl.1} parent=1 // loop_body
      %s27 = ssub.s32 %s22, 1
      %s28 = ssub.s32 %s22, 2
      %s29 = sadd.s32 %s22, 1
      %s30 = ssub.s32 %s22, %s29
      %p31 = scmp.eq.s32.totalorder %s30, 0
      %s33 = sadd.s32 %s32, 1
      %s34 = scalar_select %p31, %s32, %s33
      %p37 = pneg %p31
      %p38 = scmp.eq.s32.totalorder %s22, 1
      %p39 = por %p37, %p38
      %p40 = scmp.ne.s32.totalorder %s32, %s35
      %p41 = scmp.eq.s32.totalorder %s22, 0
      %p42 = por %p40, %p41
      %p43 = scmp.ne.s32.totalorder %s32, %s35
      %p44 = scmp.eq.s32.totalorder %s27, 1
      %p45 = por %p43, %p44
      %p46 = scmp.ne.s32.totalorder %s35, %s36
      %p47 = scmp.eq.s32.totalorder %s27, 0
      %p48 = por %p46, %p47
      %p49 = scmp.ne.s32.totalorder %s35, %s36
      %p50 = scmp.eq.s32.totalorder %s28, 1
      %p51 = por %p49, %p50
      %p53 = scmp.ne.s32.totalorder %s36, %s52
      %p54 = scmp.eq.s32.totalorder %s28, 0
      %p55 = por %p53, %p54
      %s56 = ssub.s32 %s22, %s29
      %p57 = scmp.eq.s32.totalorder %s56, 0
      %s59 = sadd.s32 %s58, 1
      %s60 = scalar_select %p57, %s58, %s59
      %p63 = pneg %p57
      %p64 = scmp.eq.s32.totalorder %s22, 1
      %p65 = por %p63, %p64
      %p66 = scmp.ne.s32.totalorder %s58, %s61
      %p67 = scmp.eq.s32.totalorder %s22, 0
      %p68 = por %p66, %p67
      %p69 = scmp.ne.s32.totalorder %s58, %s61
      %p70 = scmp.eq.s32.totalorder %s27, 1
      %p71 = por %p69, %p70
      %p72 = scmp.ne.s32.totalorder %s61, %s62
      %p73 = scmp.eq.s32.totalorder %s27, 0
      %p74 = por %p72, %p73
      %p75 = scmp.ne.s32.totalorder %s61, %s62
      %p76 = scmp.eq.s32.totalorder %s28, 1
      %p77 = por %p75, %p76
      %p79 = scmp.ne.s32.totalorder %s62, %s78
      %p80 = scmp.eq.s32.totalorder %s28, 0
      %p81 = por %p79, %p80
      %s82 = ssub.s32 %s22, %s29
      %p83 = scmp.eq.s32.totalorder %s82, 0
      %s85 = sadd.s32 %s84, 1
      %s86 = scalar_select %p83, %s84, %s85
      %p89 = pneg %p83
      %p90 = scmp.eq.s32.totalorder %s22, 1
      %p91 = por %p89, %p90
      %p92 = scmp.ne.s32.totalorder %s84, %s87
      %p93 = scmp.eq.s32.totalorder %s22, 0
      %p94 = por %p92, %p93
      %p95 = scmp.ne.s32.totalorder %s84, %s87
      %p96 = scmp.eq.s32.totalorder %s27, 1
      %p97 = por %p95, %p96
      %p98 = scmp.ne.s32.totalorder %s87, %s88
      %p99 = scmp.eq.s32.totalorder %s27, 0
      %p100 = por %p98, %p99
      %p101 = scmp.ne.s32.totalorder %s87, %s88
      %p102 = scmp.eq.s32.totalorder %s28, 1
      %p103 = por %p101, %p102
      %p105 = scmp.ne.s32.totalorder %s88, %s104
      %p106 = scmp.eq.s32.totalorder %s28, 0
      %p107 = por %p105, %p106
      %s109 = sadd.s32 %s108, 1
      %p112 = scmp.eq.s32.totalorder %s22, 1
      %p113 = scmp.ne.s32.totalorder %s108, %s110
      %p114 = scmp.eq.s32.totalorder %s22, 0
      %p115 = por %p113, %p114
      %p116 = scmp.ne.s32.totalorder %s108, %s110
      %p117 = scmp.eq.s32.totalorder %s27, 1
      %p118 = por %p116, %p117
      %p119 = scmp.ne.s32.totalorder %s110, %s111
      %p120 = scmp.eq.s32.totalorder %s27, 0
      %p121 = por %p119, %p120
      %p122 = scmp.ne.s32.totalorder %s110, %s111
      %p123 = scmp.eq.s32.totalorder %s28, 1
      %p124 = por %p122, %p123
      %p126 = scmp.ne.s32.totalorder %s111, %s125
      %p127 = scmp.eq.s32.totalorder %s28, 0
      %p128 = por %p126, %p127
      %s130 = sadd.s32 %s129, 1
      %p133 = scmp.eq.s32.totalorder %s22, 1
      %p134 = scmp.ne.s32.totalorder %s129, %s131
      %p135 = scmp.eq.s32.totalorder %s22, 0
      %p136 = por %p134, %p135
      %p137 = scmp.ne.s32.totalorder %s129, %s131
      %p138 = scmp.eq.s32.totalorder %s27, 1
      %p139 = por %p137, %p138
      %p140 = scmp.ne.s32.totalorder %s131, %s132
      %p141 = scmp.eq.s32.totalorder %s27, 0
      %p142 = por %p140, %p141
      %p143 = scmp.ne.s32.totalorder %s131, %s132
      %p144 = scmp.eq.s32.totalorder %s28, 1
      %p145 = por %p143, %p144
      %p147 = scmp.ne.s32.totalorder %s132, %s146
      %p148 = scmp.eq.s32.totalorder %s28, 0
      %p149 = por %p147, %p148
      %s151 = sadd.s32 %s150, 1
      %p154 = scmp.eq.s32.totalorder %s22, 1
      %p155 = scmp.ne.s32.totalorder %s150, %s152
      %p156 = scmp.eq.s32.totalorder %s22, 0
      %p157 = por %p155, %p156
      %p158 = scmp.ne.s32.totalorder %s150, %s152
      %p159 = scmp.eq.s32.totalorder %s27, 1
      %p160 = por %p158, %p159
      %p161 = scmp.ne.s32.totalorder %s152, %s153
      %p162 = scmp.eq.s32.totalorder %s27, 0
      %p163 = por %p161, %p162
      %p164 = scmp.ne.s32.totalorder %s152, %s153
      %p165 = scmp.eq.s32.totalorder %s28, 1
      %p166 = por %p164, %p165
      %p168 = scmp.ne.s32.totalorder %s153, %s167
      %p169 = scmp.eq.s32.totalorder %s28, 0
      %p170 = por %p168, %p169
      %s172 = sadd.s32 %s171, 1
      %p175 = scmp.eq.s32.totalorder %s22, 1
      %p176 = scmp.ne.s32.totalorder %s171, %s173
      %p177 = scmp.eq.s32.totalorder %s22, 0
      %p178 = por %p176, %p177
      %p179 = scmp.ne.s32.totalorder %s171, %s173
      %p180 = scmp.eq.s32.totalorder %s27, 1
      %p181 = por %p179, %p180
      %p182 = scmp.ne.s32.totalorder %s173, %s174
      %p183 = scmp.eq.s32.totalorder %s27, 0
      %p184 = por %p182, %p183
      %p185 = scmp.ne.s32.totalorder %s173, %s174
      %p186 = scmp.eq.s32.totalorder %s28, 1
      %p187 = por %p185, %p186
      %p189 = scmp.ne.s32.totalorder %s174, %s188
      %p190 = scmp.eq.s32.totalorder %s28, 0
      %p191 = por %p189, %p190
      %s192 = ssub.s32 %s22, %s29
      %p193 = scmp.eq.s32.totalorder %s192, 0
      %s195 = sadd.s32 %s194, 1
      %s196 = scalar_select %p193, %s194, %s195
      %p199 = pneg %p193
      %p200 = scmp.eq.s32.totalorder %s22, 1
      %p201 = por %p199, %p200
      %p202 = scmp.ne.s32.totalorder %s194, %s197
      %p203 = scmp.eq.s32.totalorder %s22, 0
      %p204 = por %p202, %p203
      %p205 = scmp.ne.s32.totalorder %s194, %s197
      %p206 = scmp.eq.s32.totalorder %s27, 1
      %p207 = por %p205, %p206
      %p208 = scmp.ne.s32.totalorder %s197, %s198
      %p209 = scmp.eq.s32.totalorder %s27, 0
      %p210 = por %p208, %p209
      %p211 = scmp.ne.s32.totalorder %s197, %s198
      %p212 = scmp.eq.s32.totalorder %s28, 1
      %p213 = por %p211, %p212
      %p215 = scmp.ne.s32.totalorder %s198, %s214
      %p216 = scmp.eq.s32.totalorder %s28, 0
      %p217 = por %p215, %p216
      %s218 = ssub.s32 %s22, %s29
      %p219 = scmp.eq.s32.totalorder %s218, 0
      %s221 = sadd.s32 %s220, 1
      %s222 = scalar_select %p219, %s220, %s221
      %p225 = pneg %p219
      %p226 = scmp.eq.s32.totalorder %s22, 1
      %p227 = por %p225, %p226
      %p228 = scmp.ne.s32.totalorder %s220, %s223
      %p229 = scmp.eq.s32.totalorder %s22, 0
      %p230 = por %p228, %p229
      %p231 = scmp.ne.s32.totalorder %s220, %s223
      %p232 = scmp.eq.s32.totalorder %s27, 1
      %p233 = por %p231, %p232
      %p234 = scmp.ne.s32.totalorder %s223, %s224
      %p235 = scmp.eq.s32.totalorder %s27, 0
      %p236 = por %p234, %p235
      %p237 = scmp.ne.s32.totalorder %s223, %s224
      %p238 = scmp.eq.s32.totalorder %s28, 1
      %p239 = por %p237, %p238
      %p241 = scmp.ne.s32.totalorder %s224, %s240
      %p242 = scmp.eq.s32.totalorder %s28, 0
      %p243 = por %p241, %p242
      %p244 = scmp.le.s32.totalorder 1, %s22
      %p245 = scmp.lt.s32.totalorder %s22, 3
      %p246 = pnand %p244, %p245
      %p247 = pneg %p246
      // Predicated region
      $region9: #{_decoder_decode_impl.1} parent=5 // pred_check
        _
      $region10: #{_decoder_decode_impl.1} parent=5 // pred_check_branch
        %249 = sbr.rel (%p246) target = $region12
      $region11: #{_decoder_decode_impl.1} parent=5 // pred_region
        %s250 = ssub.s32 %s22, 1
        // Predicated region
        $region13: #{_decoder_decode_impl.1} parent=11 // pred_check
          %p251 = pneg %p121
        $region14: #{_decoder_decode_impl.1} parent=11 // pred_check_branch
          %253 = sbr.rel (%p251) target = $region16
        $region15: #{_decoder_decode_impl.1} parent=11 // pred_region
          _
        $region16: #{_decoder_decode_impl.1} parent=11 // pred_fallthru
          _
        // Predicated region
        $region17: #{_decoder_decode_impl.1} parent=11 // pred_check
          %p254 = pneg %p142
        $region18: #{_decoder_decode_impl.1} parent=11 // pred_check_branch
          %256 = sbr.rel (%p254) target = $region20
        $region19: #{_decoder_decode_impl.1} parent=11 // pred_region
          %s258 = ssub.s32 20480, 20480
          %259 = vsyncadd [#allocation3], %s258
          %s260 = sshll.u32 [#allocation2], 4
          %s261 = int_to_ptr.vmem [resolvable:$true] %s260
          %266 = dma.hbm_to_vmem [thread:$0]  %s4, 20480, %s261, [#allocation3], 640, 640, 40
        $region20: #{_decoder_decode_impl.1} parent=11 // pred_fallthru
          _
        // Predicated region
        $region21: #{_decoder_decode_impl.1} parent=11 // pred_check
          %p267 = pneg %p163
        $region22: #{_decoder_decode_impl.1} parent=11 // pred_check_branch
          %269 = sbr.rel (%p267) target = $region24
        $region23: #{_decoder_decode_impl.1} parent=11 // pred_region
          _
        $region24: #{_decoder_decode_impl.1} parent=11 // pred_fallthru
          _
        // Predicated region
        $region25: #{_decoder_decode_impl.1} parent=11 // pred_check
          %p270 = pneg %p184
        $region26: #{_decoder_decode_impl.1} parent=11 // pred_check_branch
          %272 = sbr.rel (%p270) target = $region28
        $region27: #{_decoder_decode_impl.1} parent=11 // pred_region
          _
        $region28: #{_decoder_decode_impl.1} parent=11 // pred_fallthru
          _
      $region12: #{_decoder_decode_impl.1} parent=5 // pred_fallthru
        _
      %p273 = scmp.lt.s32.totalorder %s22, 2
      // Predicated region
      $region29: #{_decoder_decode_impl.1} parent=5 // pred_check
        %p274 = pneg %p273
      $region30: #{_decoder_decode_impl.1} parent=5 // pred_check_branch
        %276 = sbr.rel (%p274) target = $region32
      $region31: #{_decoder_decode_impl.1} parent=5 // pred_region
        // Predicated region
        $region33: #{_decoder_decode_impl.1} parent=31 // pred_check
          %p277 = pneg %p42
        $region34: #{_decoder_decode_impl.1} parent=31 // pred_check_branch
          %279 = sbr.rel (%p277) target = $region36
        $region35: #{_decoder_decode_impl.1} parent=31 // pred_region
          %p280 = scmp.lt.s32.totalorder %s22, 1
          %s281 = scalar_select %p280, %s22, 1
          %s282 = smul.addr %s281, 4
          %s283 = scalar_lea.vmem %s0, %s282
        $region36: #{_decoder_decode_impl.1} parent=31 // pred_fallthru
          _
        // Predicated region
        $region37: #{_decoder_decode_impl.1} parent=31 // pred_check
          %p284 = pneg %p68
        $region38: #{_decoder_decode_impl.1} parent=31 // pred_check_branch
          %286 = sbr.rel (%p284) target = $region40
        $region39: #{_decoder_decode_impl.1} parent=31 // pred_region
          %p287 = scmp.lt.s32.totalorder %s22, 1
          %s288 = scalar_select %p287, %s22, 1
          %s289 = smul.addr %s288, 8
          %s290 = scalar_lea.vmem %s1, %s289
        $region40: #{_decoder_decode_impl.1} parent=31 // pred_fallthru
          _
        // Predicated region
        $region41: #{_decoder_decode_impl.1} parent=31 // pred_check
          %p291 = pneg %p94
        $region42: #{_decoder_decode_impl.1} parent=31 // pred_check_branch
          %293 = sbr.rel (%p291) target = $region44
        $region43: #{_decoder_decode_impl.1} parent=31 // pred_region
          %p294 = scmp.lt.s32.totalorder %s22, 1
          %s295 = scalar_select %p294, %s22, 1
          %s296 = scalar_lea.vmem %s2, %s295
        $region44: #{_decoder_decode_impl.1} parent=31 // pred_fallthru
          _
      $region32: #{_decoder_decode_impl.1} parent=5 // pred_fallthru
        _
      %p297 = scmp.le.s32.totalorder 1, %s22
      %p298 = scmp.lt.s32.totalorder %s22, 3
      %p299 = pnand %p297, %p298
      %p300 = pneg %p299
      // Predicated region
      $region45: #{_decoder_decode_impl.1} parent=5 // pred_check
        _
      $region46: #{_decoder_decode_impl.1} parent=5 // pred_check_branch
        %302 = sbr.rel (%p299) target = $region48
      $region47: #{_decoder_decode_impl.1} parent=5 // pred_region
        %s303 = ssub.s32 %s22, 1
        // Predicated region
        $region49: #{_decoder_decode_impl.1} parent=47 // pred_check
          %p304 = pneg %p142
        $region50: #{_decoder_decode_impl.1} parent=47 // pred_check_branch
          %306 = sbr.rel (%p304) target = $region52
        $region51: #{_decoder_decode_impl.1} parent=47 // pred_region
          %307 = dma.done [#allocation3], 20480
        $region52: #{_decoder_decode_impl.1} parent=47 // pred_fallthru
          _
        %p308 = scmp.lt.s32.totalorder %s27, 1
        %s309 = scalar_select %p308, %s27, 1
        %s310 = smul.addr %s309, 4
        %s311 = scalar_lea.vmem %s0, %s310
        %p312 = pneg %p48
        %p313 = pneg %p45
        %p314 = scmp.lt.s32.totalorder %s27, 1
        %s315 = scalar_select %p314, %s27, 1
        %s316 = smul.addr %s315, 8
        %s317 = scalar_lea.vmem %s1, %s316
        %p318 = pneg %p74
        %p319 = pneg %p71
        %p320 = scmp.lt.s32.totalorder %s27, 1
        %s321 = scalar_select %p320, %s27, 1
        %s322 = scalar_lea.vmem %s2, %s321
        %p323 = pneg %p100
        %p324 = pneg %p97
        %p325 = pneg %p121
        %p326 = pneg %p118
        %p327 = pneg %p142
        %p328 = pneg %p139
        %p329 = pneg %p163
        %p330 = pneg %p160
        %p331 = pneg %p184
        %p332 = pneg %p181
        %p333 = pneg %p210
        %p334 = pneg %p207
        %s335 = sand.u32 %s197, 1
        %s336 = scalar_lea.sflag [#allocation4], %s335
        %s337 = sand.u32 %s197, 1
        %s338 = scalar_lea.vmem [#allocation5], %s337
        %p339 = pneg %p236
        %p340 = pneg %p233
        %s341 = sand.u32 %s223, 1
        %s342 = scalar_lea.sflag [#allocation7], %s341
        %s343 = sand.u32 %s223, 1
        %s344 = scalar_lea.vmem [#allocation6], %s343
        %p345 = scmp.lt.s32.totalorder %s27, 1
        %s346 = scalar_select %p345, %s27, 1
        %s347 = smul.addr %s346, 4
        %s348 = scalar_lea.vmem %s0, %s347
        %p349 = scmp.lt.s32.totalorder %s27, 1
        %s350 = scalar_select %p349, %s27, 1
        %s351 = smul.addr %s350, 8
        %s352 = scalar_lea.vmem %s1, %s351
        %p353 = scmp.lt.s32.totalorder %s27, 1
        %s354 = scalar_select %p353, %s27, 1
        %s355 = scalar_lea.vmem %s2, %s354
        %v356 = vld [vmem:[%s352] sm:$0xff]
        %v357 = vld [vmem:[%s6] sm:$0x1]
        %v358 = vld [vmem:[%s3] sm:$0xff]
        %v359 = vld [vmem:[%s3 + $0x8] sm:$0xff]
        %v360 = vld [vmem:[%s3 + $0x10] sm:$0xff]
        %v361 = vld [vmem:[%s3 + $0x18] sm:$0xff]
        %v362 = vld [vmem:[%s3 + $0x20] sm:$0xff]
        %v363 = vld [vmem:[%s3 + $0x28] sm:$0xff]
        %v364 = vld [vmem:[%s3 + $0x30] sm:$0xff]
        %v365 = vld [vmem:[%s3 + $0x38] sm:$0xff]
        %v366 = vld [vmem:[%s3 + $0x40] sm:$0xff]
        %v367 = vld [vmem:[%s3 + $0x48] sm:$0xff]
        %v368 = vld [vmem:[%s3 + $0x50] sm:$0xff]
        %v369 = vld [vmem:[%s3 + $0x58] sm:$0xff]
        %v370 = vld [vmem:[%s3 + $0x60] sm:$0xff]
        %v371 = vld [vmem:[%s3 + $0x68] sm:$0xff]
        %v372 = vld [vmem:[%s3 + $0x70] sm:$0xff]
        %v373 = vld [vmem:[%s3 + $0x78] sm:$0xff]
        %v374 = vld [vmem:[#allocation2] sm:$0xff]
        %v375 = vld [vmem:[#allocation2 + $0x8] sm:$0xff]
        %v376 = vld [vmem:[#allocation2 + $0x10] sm:$0xff]
        %v377 = vld [vmem:[#allocation2 + $0x18] sm:$0xff]
        %v378 = vld [vmem:[#allocation2 + $0x20] sm:$0xff]
        %v379 = vld [vmem:[#allocation2 + $0x28] sm:$0xff]
        %v380 = vld [vmem:[#allocation2 + $0x30] sm:$0xff]
        %v381 = vld [vmem:[#allocation2 + $0x38] sm:$0xff]
        %v382 = vld [vmem:[#allocation2 + $0x40] sm:$0xff]
        %v383 = vld [vmem:[#allocation2 + $0x48] sm:$0xff]
        %v384 = vld [vmem:[#allocation2 + $0x50] sm:$0xff]
        %v385 = vld [vmem:[#allocation2 + $0x58] sm:$0xff]
        %v386 = vld [vmem:[#allocation2 + $0x60] sm:$0xff]
        %v387 = vld [vmem:[#allocation2 + $0x68] sm:$0xff]
        %v388 = vld [vmem:[#allocation2 + $0x70] sm:$0xff]
        %v389 = vld [vmem:[#allocation2 + $0x78] sm:$0xff]
        %v390 = vld [vmem:[#allocation2 + $0x80] sm:$0xff]
        %v391 = vld [vmem:[#allocation2 + $0x88] sm:$0xff]
        %v392 = vld [vmem:[#allocation2 + $0x90] sm:$0xff]
        %v393 = vld [vmem:[#allocation2 + $0x98] sm:$0xff]
        %v394 = vld [vmem:[#allocation2 + $0xa0] sm:$0xff]
        %v395 = vld [vmem:[#allocation2 + $0xa8] sm:$0xff]
        %v396 = vld [vmem:[#allocation2 + $0xb0] sm:$0xff]
        %v397 = vld [vmem:[#allocation2 + $0xb8] sm:$0xff]
        %v398 = vld [vmem:[#allocation2 + $0xc0] sm:$0xff]
        %v399 = vld [vmem:[#allocation2 + $0xc8] sm:$0xff]
        %v400 = vld [vmem:[#allocation2 + $0xd0] sm:$0xff]
        %v401 = vld [vmem:[#allocation2 + $0xd8] sm:$0xff]
        %v402 = vld [vmem:[#allocation2 + $0xe0] sm:$0xff]
        %v403 = vld [vmem:[#allocation2 + $0xe8] sm:$0xff]
        %v404 = vld [vmem:[#allocation2 + $0xf0] sm:$0xff]
        %v405 = vld [vmem:[#allocation2 + $0xf8] sm:$0xff]
        %v406 = vld [vmem:[#allocation2 + $0x100] sm:$0xff]
        %v407 = vld [vmem:[#allocation2 + $0x108] sm:$0xff]
        %v408 = vld [vmem:[#allocation2 + $0x110] sm:$0xff]
        %v409 = vld [vmem:[#allocation2 + $0x118] sm:$0xff]
        %v410 = vld [vmem:[#allocation2 + $0x120] sm:$0xff]
        %v411 = vld [vmem:[#allocation2 + $0x128] sm:$0xff]
        %v412 = vld [vmem:[#allocation2 + $0x130] sm:$0xff]
        %v413 = vld [vmem:[#allocation2 + $0x138] sm:$0xff]
        %v414 = vld [vmem:[#allocation2 + $0x140] sm:$0xff]
        %v415 = vld [vmem:[#allocation2 + $0x148] sm:$0xff]
        %v416 = vld [vmem:[#allocation2 + $0x150] sm:$0xff]
        %v417 = vld [vmem:[#allocation2 + $0x158] sm:$0xff]
        %v418 = vld [vmem:[#allocation2 + $0x160] sm:$0xff]
        %v419 = vld [vmem:[#allocation2 + $0x168] sm:$0xff]
        %v420 = vld [vmem:[#allocation2 + $0x170] sm:$0xff]
        %v421 = vld [vmem:[#allocation2 + $0x178] sm:$0xff]
        %v422 = vld [vmem:[#allocation2 + $0x180] sm:$0xff]
        %v423 = vld [vmem:[#allocation2 + $0x188] sm:$0xff]
        %v424 = vld [vmem:[#allocation2 + $0x190] sm:$0xff]
        %v425 = vld [vmem:[#allocation2 + $0x198] sm:$0xff]
        %v426 = vld [vmem:[#allocation2 + $0x1a0] sm:$0xff]
        %v427 = vld [vmem:[#allocation2 + $0x1a8] sm:$0xff]
        %v428 = vld [vmem:[#allocation2 + $0x1b0] sm:$0xff]
        %v429 = vld [vmem:[#allocation2 + $0x1b8] sm:$0xff]
        %v430 = vld [vmem:[#allocation2 + $0x1c0] sm:$0xff]
        %v431 = vld [vmem:[#allocation2 + $0x1c8] sm:$0xff]
        %v432 = vld [vmem:[#allocation2 + $0x1d0] sm:$0xff]
        %v433 = vld [vmem:[#allocation2 + $0x1d8] sm:$0xff]
        %v434 = vld [vmem:[#allocation2 + $0x1e0] sm:$0xff]
        %v435 = vld [vmem:[#allocation2 + $0x1e8] sm:$0xff]
        %v436 = vld [vmem:[#allocation2 + $0x1f0] sm:$0xff]
        %v437 = vld [vmem:[#allocation2 + $0x1f8] sm:$0xff]
        %v438 = vld [vmem:[#allocation2 + $0x200] sm:$0xff]
        %v439 = vld [vmem:[#allocation2 + $0x208] sm:$0xff]
        %v440 = vld [vmem:[#allocation2 + $0x210] sm:$0xff]
        %v441 = vld [vmem:[#allocation2 + $0x218] sm:$0xff]
        %v442 = vld [vmem:[#allocation2 + $0x220] sm:$0xff]
        %v443 = vld [vmem:[#allocation2 + $0x228] sm:$0xff]
        %v444 = vld [vmem:[#allocation2 + $0x230] sm:$0xff]
        %v445 = vld [vmem:[#allocation2 + $0x238] sm:$0xff]
        %v446 = vld [vmem:[#allocation2 + $0x240] sm:$0xff]
        %v447 = vld [vmem:[#allocation2 + $0x248] sm:$0xff]
        %v448 = vld [vmem:[#allocation2 + $0x250] sm:$0xff]
        %v449 = vld [vmem:[#allocation2 + $0x258] sm:$0xff]
        %v450 = vld [vmem:[#allocation2 + $0x260] sm:$0xff]
        %v451 = vld [vmem:[#allocation2 + $0x268] sm:$0xff]
        %v452 = vld [vmem:[#allocation2 + $0x270] sm:$0xff]
        %v453 = vld [vmem:[#allocation2 + $0x278] sm:$0xff]
        %v454 = vld [vmem:[#allocation2 + $0x280] sm:$0xff]
        %v455 = vld [vmem:[#allocation2 + $0x288] sm:$0xff]
        %v456 = vld [vmem:[#allocation2 + $0x290] sm:$0xff]
        %v457 = vld [vmem:[#allocation2 + $0x298] sm:$0xff]
        %v458 = vld [vmem:[#allocation2 + $0x2a0] sm:$0xff]
        %v459 = vld [vmem:[#allocation2 + $0x2a8] sm:$0xff]
        %v460 = vld [vmem:[#allocation2 + $0x2b0] sm:$0xff]
        %v461 = vld [vmem:[#allocation2 + $0x2b8] sm:$0xff]
        %v462 = vld [vmem:[#allocation2 + $0x2c0] sm:$0xff]
        %v463 = vld [vmem:[#allocation2 + $0x2c8] sm:$0xff]
        %v464 = vld [vmem:[#allocation2 + $0x2d0] sm:$0xff]
        %v465 = vld [vmem:[#allocation2 + $0x2d8] sm:$0xff]
        %v466 = vld [vmem:[#allocation2 + $0x2e0] sm:$0xff]
        %v467 = vld [vmem:[#allocation2 + $0x2e8] sm:$0xff]
        %v468 = vld [vmem:[#allocation2 + $0x2f0] sm:$0xff]
        %v469 = vld [vmem:[#allocation2 + $0x2f8] sm:$0xff]
        %v470 = vld [vmem:[#allocation2 + $0x300] sm:$0xff]
        %v471 = vld [vmem:[#allocation2 + $0x308] sm:$0xff]
        %v472 = vld [vmem:[#allocation2 + $0x310] sm:$0xff]
        %v473 = vld [vmem:[#allocation2 + $0x318] sm:$0xff]
        %v474 = vld [vmem:[#allocation2 + $0x320] sm:$0xff]
        %v475 = vld [vmem:[#allocation2 + $0x328] sm:$0xff]
        %v476 = vld [vmem:[#allocation2 + $0x330] sm:$0xff]
        %v477 = vld [vmem:[#allocation2 + $0x338] sm:$0xff]
        %v478 = vld [vmem:[#allocation2 + $0x340] sm:$0xff]
        %v479 = vld [vmem:[#allocation2 + $0x348] sm:$0xff]
        %v480 = vld [vmem:[#allocation2 + $0x350] sm:$0xff]
        %v481 = vld [vmem:[#allocation2 + $0x358] sm:$0xff]
        %v482 = vld [vmem:[#allocation2 + $0x360] sm:$0xff]
        %v483 = vld [vmem:[#allocation2 + $0x368] sm:$0xff]
        %v484 = vld [vmem:[#allocation2 + $0x370] sm:$0xff]
        %v485 = vld [vmem:[#allocation2 + $0x378] sm:$0xff]
        %v486 = vld [vmem:[#allocation2 + $0x380] sm:$0xff]
        %v487 = vld [vmem:[#allocation2 + $0x388] sm:$0xff]
        %v488 = vld [vmem:[#allocation2 + $0x390] sm:$0xff]
        %v489 = vld [vmem:[#allocation2 + $0x398] sm:$0xff]
        %v490 = vld [vmem:[#allocation2 + $0x3a0] sm:$0xff]
        %v491 = vld [vmem:[#allocation2 + $0x3a8] sm:$0xff]
        %v492 = vld [vmem:[#allocation2 + $0x3b0] sm:$0xff]
        %v493 = vld [vmem:[#allocation2 + $0x3b8] sm:$0xff]
        %v494 = vld [vmem:[#allocation2 + $0x3c0] sm:$0xff]
        %v495 = vld [vmem:[#allocation2 + $0x3c8] sm:$0xff]
        %v496 = vld [vmem:[#allocation2 + $0x3d0] sm:$0xff]
        %v497 = vld [vmem:[#allocation2 + $0x3d8] sm:$0xff]
        %v498 = vld [vmem:[#allocation2 + $0x3e0] sm:$0xff]
        %v499 = vld [vmem:[#allocation2 + $0x3e8] sm:$0xff]
        %v500 = vld [vmem:[#allocation2 + $0x3f0] sm:$0xff]
        %v501 = vld [vmem:[#allocation2 + $0x3f8] sm:$0xff]
        %v502 = vld [vmem:[#allocation2 + $0x400] sm:$0xff]
        %v503 = vld [vmem:[#allocation2 + $0x408] sm:$0xff]
        %v504 = vld [vmem:[#allocation2 + $0x410] sm:$0xff]
        %v505 = vld [vmem:[#allocation2 + $0x418] sm:$0xff]
        %v506 = vld [vmem:[#allocation2 + $0x420] sm:$0xff]
        %v507 = vld [vmem:[#allocation2 + $0x428] sm:$0xff]
        %v508 = vld [vmem:[#allocation2 + $0x430] sm:$0xff]
        %v509 = vld [vmem:[#allocation2 + $0x438] sm:$0xff]
        %v510 = vld [vmem:[#allocation2 + $0x440] sm:$0xff]
        %v511 = vld [vmem:[#allocation2 + $0x448] sm:$0xff]
        %v512 = vld [vmem:[#allocation2 + $0x450] sm:$0xff]
        %v513 = vld [vmem:[#allocation2 + $0x458] sm:$0xff]
        %v514 = vld [vmem:[#allocation2 + $0x460] sm:$0xff]
        %v515 = vld [vmem:[#allocation2 + $0x468] sm:$0xff]
        %v516 = vld [vmem:[#allocation2 + $0x470] sm:$0xff]
        %v517 = vld [vmem:[#allocation2 + $0x478] sm:$0xff]
        %v518 = vld [vmem:[#allocation2 + $0x480] sm:$0xff]
        %v519 = vld [vmem:[#allocation2 + $0x488] sm:$0xff]
        %v520 = vld [vmem:[#allocation2 + $0x490] sm:$0xff]
        %v521 = vld [vmem:[#allocation2 + $0x498] sm:$0xff]
        %v522 = vld [vmem:[#allocation2 + $0x4a0] sm:$0xff]
        %v523 = vld [vmem:[#allocation2 + $0x4a8] sm:$0xff]
        %v524 = vld [vmem:[#allocation2 + $0x4b0] sm:$0xff]
        %v525 = vld [vmem:[#allocation2 + $0x4b8] sm:$0xff]
        %v526 = vld [vmem:[#allocation2 + $0x4c0] sm:$0xff]
        %v527 = vld [vmem:[#allocation2 + $0x4c8] sm:$0xff]
        %v528 = vld [vmem:[#allocation2 + $0x4d0] sm:$0xff]
        %v529 = vld [vmem:[#allocation2 + $0x4d8] sm:$0xff]
        %v530 = vld [vmem:[#allocation2 + $0x4e0] sm:$0xff]
        %v531 = vld [vmem:[#allocation2 + $0x4e8] sm:$0xff]
        %v532 = vld [vmem:[#allocation2 + $0x4f0] sm:$0xff]
        %v533 = vld [vmem:[#allocation2 + $0x4f8] sm:$0xff]
        %v534 = vld [vmem:[%s5] sm:$0xff]
        %v535 = vld [vmem:[%s5 + $0x8] sm:$0xff]
        %v536 = vld [vmem:[%s5 + $0x10] sm:$0xff]
        %v537 = vld [vmem:[%s5 + $0x18] sm:$0xff]
        %v538 = vld [vmem:[%s5 + $0x20] sm:$0xff]
        %v539 = vld [vmem:[%s5 + $0x28] sm:$0xff]
        %v540 = vld [vmem:[%s5 + $0x30] sm:$0xff]
        %v541 = vld [vmem:[%s5 + $0x38] sm:$0xff]
        %v542 = vld [vmem:[%s5 + $0x40] sm:$0xff]
        %v543 = vld [vmem:[%s5 + $0x48] sm:$0xff]
        %v544 = vld [vmem:[%s5 + $0x50] sm:$0xff]
        %v545 = vld [vmem:[%s5 + $0x58] sm:$0xff]
        %v546 = vld [vmem:[%s5 + $0x60] sm:$0xff]
        %v547 = vld [vmem:[%s5 + $0x68] sm:$0xff]
        %v548 = vld [vmem:[%s5 + $0x70] sm:$0xff]
        %v549 = vld [vmem:[%s5 + $0x78] sm:$0xff]
        %v550 = vld [vmem:[%s355] sm:$0x1]
        %v551 = vld [vmem:[%s348] sm:$0xf]
        %552 = vmatprep.subr.mxu0 0.0
        %553 = vmatpush1.msra.mxu0 %v373
        %554 = vmatprep.subr.mxu0 0.0
        %555 = vmatpush1.msra.mxu0 %v372
        %556 = vmatprep.subr.mxu0 0.0
        %557 = vmatpush1.msra.mxu0 %v371
        %558 = vmatprep.subr.mxu0 0.0
        %559 = vmatpush1.msra.mxu0 %v370
        %560 = vmatprep.subr.mxu0 0.0
        %561 = vmatpush1.msra.mxu0 %v369
        %562 = vmatprep.subr.mxu0 0.0
        %563 = vmatpush1.msra.mxu0 %v368
        %564 = vmatprep.subr.mxu0 0.0
        %565 = vmatpush1.msra.mxu0 %v367
        %566 = vmatprep.subr.mxu0 0.0
        %567 = vmatpush1.msra.mxu0 %v366
        %568 = vmatprep.subr.mxu0 0.0
        %569 = vmatpush1.msra.mxu0 %v365
        %570 = vmatprep.subr.mxu0 0.0
        %571 = vmatpush1.msra.mxu0 %v364
        %572 = vmatprep.subr.mxu0 0.0
        %573 = vmatpush1.msra.mxu0 %v363
        %574 = vmatprep.subr.mxu0 0.0
        %575 = vmatpush1.msra.mxu0 %v362
        %576 = vmatprep.subr.mxu0 0.0
        %577 = vmatpush1.msra.mxu0 %v361
        %578 = vmatprep.subr.mxu0 0.0
        %579 = vmatpush1.msra.mxu0 %v360
        %580 = vmatprep.subr.mxu0 0.0
        %581 = vmatpush1.msra.mxu0 %v359
        %582 = vmatprep.subr.mxu0 0.0
        %583 = vmatpush1.msra.mxu0 %v358
        %584 = vmatprep.subr.mxu0 0.0
        %585 = vmatpush2.msra.mxu0 0.0
        %586 = vmatprep.subr.mxu0 0.0
        %587 = vmatpush2.msra.mxu0 0.0
        %588 = vmatprep.subr.mxu0 0.0
        %589 = vmatpush2.msra.mxu0 0.0
        %590 = vmatprep.subr.mxu0 0.0
        %591 = vmatpush2.msra.mxu0 0.0
        %592 = vmatprep.subr.mxu0 0.0
        %593 = vmatpush2.msra.mxu0 0.0
        %594 = vmatprep.subr.mxu0 0.0
        %595 = vmatpush2.msra.mxu0 0.0
        %596 = vmatprep.subr.mxu0 0.0
        %597 = vmatpush2.msra.mxu0 0.0
        %598 = vmatprep.subr.mxu0 0.0
        %599 = vmatpush2.msra.mxu0 0.0
        %600 = vmatprep.subr.mxu0 0.0
        %601 = vmatpush2.msra.mxu0 0.0
        %602 = vmatprep.subr.mxu0 0.0
        %603 = vmatpush2.msra.mxu0 0.0
        %604 = vmatprep.subr.mxu0 0.0
        %605 = vmatpush2.msra.mxu0 0.0
        %606 = vmatprep.subr.mxu0 0.0
        %607 = vmatpush2.msra.mxu0 0.0
        %608 = vmatprep.subr.mxu0 0.0
        %609 = vmatpush2.msra.mxu0 0.0
        %610 = vmatprep.subr.mxu0 0.0
        %611 = vmatpush2.msra.mxu0 0.0
        %612 = vmatprep.subr.mxu0 0.0
        %613 = vmatpush2.msra.mxu0 0.0
        %614 = vmatprep.subr.mxu0 0.0
        %615 = vmatpush2.msra.mxu0 0.0
        %616 = vmatprep.mubr.f32.mxu0 0.0
        %617 = vmatmul.mubr.f32.gmra.mxu0 %v550
        %v618 = vpop.f32.mrf.mxu0
        %v619 = vadd.f32 0.0, %v618
        %v620 = vpop.f32.mrf.mxu0
        %621 = vdwg.mxu0
        %v622 = vlaneseq
        %v623 = vshrl.u32 %v622, 7
        %v624 = vsub.s32 0, %v623
        %v625 = vrot.slane %v619, %v624
        %v626 = vmul.f32 %v625, %v356
        %627 = vadd.xlane.f32.xlu0 %v626
        %v628 = vpop.xlane.xlu0 %627
        %v629 = vrot.slane %v628, 4
        %v630 = vmax.f32 %v628, %v629
        %v631 = vrot.slane %v630, 2
        %v632 = vmax.f32 %v630, %v631
        %v633 = vrot.slane %v632, 1
        %v634 = vmax.f32 %v632, %v633
        %v635 = vsub.f32 %v628, %v634
        %v636 = vmul.f32 %v635, 1.442695
        %v637 = vpow.pop %v636
        %v638 = vrot.slane %v637, 4
        %v639 = vadd.f32 %v637, %v638
        %v640 = vrot.slane %v639, 2
        %v641 = vadd.f32 %v639, %v640
        %v642 = vrot.slane %v641, 1
        %v643 = vadd.f32 %v641, %v642
        %v644 = vrcp.pop %v643
        %v645 = vmul.f32 %v637, %v644
        %v646 = vmul.f32 %v645, %v356
        %v647 = vrot.slane %v646, 4
        %v648 = vadd.f32 %v646, %v647
        %v649 = vrot.slane %v648, 2
        %v650 = vadd.f32 %v648, %v649
        %v651 = vrot.slane %v650, 1
        %v652 = vadd.f32 %v650, %v651
        %653 = vmatprep.subr.mxu0 %v450
        %654 = vmatpush1.msra.mxu0 %v449
        %655 = vmatprep.subr.mxu0 %v445
        %656 = vmatpush1.msra.mxu0 %v444
        %657 = vmatprep.subr.mxu0 %v440
        %658 = vmatpush1.msra.mxu0 %v439
        %659 = vmatprep.subr.mxu0 %v435
        %660 = vmatpush1.msra.mxu0 %v434
        %661 = vmatprep.subr.mxu0 %v430
        %662 = vmatpush1.msra.mxu0 %v429
        %663 = vmatprep.subr.mxu0 %v425
        %664 = vmatpush1.msra.mxu0 %v424
        %665 = vmatprep.subr.mxu0 %v420
        %666 = vmatpush1.msra.mxu0 %v419
        %667 = vmatprep.subr.mxu0 %v415
        %668 = vmatpush1.msra.mxu0 %v414
        %669 = vmatprep.subr.mxu0 %v410
        %670 = vmatpush1.msra.mxu0 %v409
        %671 = vmatprep.subr.mxu0 %v405
        %672 = vmatpush1.msra.mxu0 %v404
        %673 = vmatprep.subr.mxu0 %v400
        %674 = vmatpush1.msra.mxu0 %v399
        %675 = vmatprep.subr.mxu0 %v395
        %676 = vmatpush1.msra.mxu0 %v394
        %677 = vmatprep.subr.mxu0 %v390
        %678 = vmatpush1.msra.mxu0 %v389
        %679 = vmatprep.subr.mxu0 %v385
        %680 = vmatpush1.msra.mxu0 %v384
        %681 = vmatprep.subr.mxu0 %v380
        %682 = vmatpush1.msra.mxu0 %v379
        %683 = vmatprep.subr.mxu0 %v375
        %684 = vmatpush1.msra.mxu0 %v374
        %685 = vmatprep.subr.mxu0 %v530
        %686 = vmatpush2.msra.mxu0 %v529
        %687 = vmatprep.subr.mxu0 %v525
        %688 = vmatpush2.msra.mxu0 %v524
        %689 = vmatprep.subr.mxu0 %v520
        %690 = vmatpush2.msra.mxu0 %v519
        %691 = vmatprep.subr.mxu0 %v515
        %692 = vmatpush2.msra.mxu0 %v514
        %693 = vmatprep.subr.mxu0 %v510
        %694 = vmatpush2.msra.mxu0 %v509
        %695 = vmatprep.subr.mxu0 %v505
        %696 = vmatpush2.msra.mxu0 %v504
        %697 = vmatprep.subr.mxu0 %v500
        %698 = vmatpush2.msra.mxu0 %v499
        %699 = vmatprep.subr.mxu0 %v495
        %700 = vmatpush2.msra.mxu0 %v494
        %701 = vmatprep.subr.mxu0 %v490
        %702 = vmatpush2.msra.mxu0 %v489
        %703 = vmatprep.subr.mxu0 %v485
        %704 = vmatpush2.msra.mxu0 %v484
        %705 = vmatprep.subr.mxu0 %v480
        %706 = vmatpush2.msra.mxu0 %v479
        %707 = vmatprep.subr.mxu0 %v475
        %708 = vmatpush2.msra.mxu0 %v474
        %709 = vmatprep.subr.mxu0 %v470
        %710 = vmatpush2.msra.mxu0 %v469
        %711 = vmatprep.subr.mxu0 %v465
        %712 = vmatpush2.msra.mxu0 %v464
        %713 = vmatprep.subr.mxu0 %v460
        %714 = vmatpush2.msra.mxu0 %v459
        %715 = vmatprep.subr.mxu0 %v455
        %716 = vmatpush2.msra.mxu0 %v454
        %717 = vmatprep.mubr.f32.mxu0 %v652
        %718 = vmatmul.mubr.f32.gmra.mxu0 %v550
        %v719 = vpop.f32.mrf.mxu0
        %v720 = vadd.f32 0.0, %v719
        %v721 = vpop.f32.mrf.mxu0
        %v722 = vadd.f32 0.0, %v721
        %723 = vdwg.mxu0
        %724 = vmatprep.subr.mxu0 %v452
        %725 = vmatpush1.msra.mxu0 %v451
        %726 = vmatprep.subr.mxu0 %v447
        %727 = vmatpush1.msra.mxu0 %v446
        %728 = vmatprep.subr.mxu0 %v442
        %729 = vmatpush1.msra.mxu0 %v441
        %730 = vmatprep.subr.mxu0 %v437
        %731 = vmatpush1.msra.mxu0 %v436
        %732 = vmatprep.subr.mxu0 %v432
        %733 = vmatpush1.msra.mxu0 %v431
        %734 = vmatprep.subr.mxu0 %v427
        %735 = vmatpush1.msra.mxu0 %v426
        %736 = vmatprep.subr.mxu0 %v422
        %737 = vmatpush1.msra.mxu0 %v421
        %738 = vmatprep.subr.mxu0 %v417
        %739 = vmatpush1.msra.mxu0 %v416
        %740 = vmatprep.subr.mxu0 %v412
        %741 = vmatpush1.msra.mxu0 %v411
        %742 = vmatprep.subr.mxu0 %v407
        %743 = vmatpush1.msra.mxu0 %v406
        %744 = vmatprep.subr.mxu0 %v402
        %745 = vmatpush1.msra.mxu0 %v401
        %746 = vmatprep.subr.mxu0 %v397
        %747 = vmatpush1.msra.mxu0 %v396
        %748 = vmatprep.subr.mxu0 %v392
        %749 = vmatpush1.msra.mxu0 %v391
        %750 = vmatprep.subr.mxu0 %v387
        %751 = vmatpush1.msra.mxu0 %v386
        %752 = vmatprep.subr.mxu0 %v382
        %753 = vmatpush1.msra.mxu0 %v381
        %754 = vmatprep.subr.mxu0 %v377
        %755 = vmatpush1.msra.mxu0 %v376
        %756 = vmatprep.subr.mxu0 %v532
        %757 = vmatpush2.msra.mxu0 %v531
        %758 = vmatprep.subr.mxu0 %v527
        %759 = vmatpush2.msra.mxu0 %v526
        %760 = vmatprep.subr.mxu0 %v522
        %761 = vmatpush2.msra.mxu0 %v521
        %762 = vmatprep.subr.mxu0 %v517
        %763 = vmatpush2.msra.mxu0 %v516
        %764 = vmatprep.subr.mxu0 %v512
        %765 = vmatpush2.msra.mxu0 %v511
        %766 = vmatprep.subr.mxu0 %v507
        %767 = vmatpush2.msra.mxu0 %v506
        %768 = vmatprep.subr.mxu0 %v502
        %769 = vmatpush2.msra.mxu0 %v501
        %770 = vmatprep.subr.mxu0 %v497
        %771 = vmatpush2.msra.mxu0 %v496
        %772 = vmatprep.subr.mxu0 %v492
        %773 = vmatpush2.msra.mxu0 %v491
        %774 = vmatprep.subr.mxu0 %v487
        %775 = vmatpush2.msra.mxu0 %v486
        %776 = vmatprep.subr.mxu0 %v482
        %777 = vmatpush2.msra.mxu0 %v481
        %778 = vmatprep.subr.mxu0 %v477
        %779 = vmatpush2.msra.mxu0 %v476
        %780 = vmatprep.subr.mxu0 %v472
        %781 = vmatpush2.msra.mxu0 %v471
        %782 = vmatprep.subr.mxu0 %v467
        %783 = vmatpush2.msra.mxu0 %v466
        %784 = vmatprep.subr.mxu0 %v462
        %785 = vmatpush2.msra.mxu0 %v461
        %786 = vmatprep.subr.mxu0 %v457
        %787 = vmatpush2.msra.mxu0 %v456
        %788 = vmatprep.mubr.f32.mxu0 %v652
        %789 = vmatmul.mubr.f32.gmra.mxu0 %v550
        %v790 = vpop.f32.mrf.mxu0
        %v791 = vadd.f32 0.0, %v790
        %v792 = vpop.f32.mrf.mxu0
        %v793 = vadd.f32 0.0, %v792
        %794 = vdwg.mxu0
        %795 = vmatprep.subr.mxu0 0.0
        %796 = vmatpush1.msra.mxu0 %v453
        %797 = vmatprep.subr.mxu0 0.0
        %798 = vmatpush1.msra.mxu0 %v448
        %799 = vmatprep.subr.mxu0 0.0
        %800 = vmatpush1.msra.mxu0 %v443
        %801 = vmatprep.subr.mxu0 0.0
        %802 = vmatpush1.msra.mxu0 %v438
        %803 = vmatprep.subr.mxu0 0.0
        %804 = vmatpush1.msra.mxu0 %v433
        %805 = vmatprep.subr.mxu0 0.0
        %806 = vmatpush1.msra.mxu0 %v428
        %807 = vmatprep.subr.mxu0 0.0
        %808 = vmatpush1.msra.mxu0 %v423
        %809 = vmatprep.subr.mxu0 0.0
        %810 = vmatpush1.msra.mxu0 %v418
        %811 = vmatprep.subr.mxu0 0.0
        %812 = vmatpush1.msra.mxu0 %v413
        %813 = vmatprep.subr.mxu0 0.0
        %814 = vmatpush1.msra.mxu0 %v408
        %815 = vmatprep.subr.mxu0 0.0
        %816 = vmatpush1.msra.mxu0 %v403
        %817 = vmatprep.subr.mxu0 0.0
        %818 = vmatpush1.msra.mxu0 %v398
        %819 = vmatprep.subr.mxu0 0.0
        %820 = vmatpush1.msra.mxu0 %v393
        %821 = vmatprep.subr.mxu0 0.0
        %822 = vmatpush1.msra.mxu0 %v388
        %823 = vmatprep.subr.mxu0 0.0
        %824 = vmatpush1.msra.mxu0 %v383
        %825 = vmatprep.subr.mxu0 0.0
        %826 = vmatpush1.msra.mxu0 %v378
        %827 = vmatprep.subr.mxu0 0.0
        %828 = vmatpush2.msra.mxu0 %v533
        %829 = vmatprep.subr.mxu0 0.0
        %830 = vmatpush2.msra.mxu0 %v528
        %831 = vmatprep.subr.mxu0 0.0
        %832 = vmatpush2.msra.mxu0 %v523
        %833 = vmatprep.subr.mxu0 0.0
        %834 = vmatpush2.msra.mxu0 %v518
        %835 = vmatprep.subr.mxu0 0.0
        %836 = vmatpush2.msra.mxu0 %v513
        %837 = vmatprep.subr.mxu0 0.0
        %838 = vmatpush2.msra.mxu0 %v508
        %839 = vmatprep.subr.mxu0 0.0
        %840 = vmatpush2.msra.mxu0 %v503
        %841 = vmatprep.subr.mxu0 0.0
        %842 = vmatpush2.msra.mxu0 %v498
        %843 = vmatprep.subr.mxu0 0.0
        %844 = vmatpush2.msra.mxu0 %v493
        %845 = vmatprep.subr.mxu0 0.0
        %846 = vmatpush2.msra.mxu0 %v488
        %847 = vmatprep.subr.mxu0 0.0
        %848 = vmatpush2.msra.mxu0 %v483
        %849 = vmatprep.subr.mxu0 0.0
        %850 = vmatpush2.msra.mxu0 %v478
        %851 = vmatprep.subr.mxu0 0.0
        %852 = vmatpush2.msra.mxu0 %v473
        %853 = vmatprep.subr.mxu0 0.0
        %854 = vmatpush2.msra.mxu0 %v468
        %855 = vmatprep.subr.mxu0 0.0
        %856 = vmatpush2.msra.mxu0 %v463
        %857 = vmatprep.subr.mxu0 0.0
        %858 = vmatpush2.msra.mxu0 %v458
        %859 = vmatprep.mubr.f32.mxu0 %v652
        %860 = vmatmul.mubr.f32.gmra.mxu0 %v550
        %v861 = vpop.f32.mrf.mxu0
        %v862 = vadd.f32 0.0, %v861
        %v863 = vpop.f32.mrf.mxu0
        %864 = vdwg.mxu0
        %v865 = vadd.f32 %v551, %v720
        %v866 = vxor.u32 %v865, 2147483648
        %v867 = vmul.f32 %v866, 1.442695
        %v868 = vpow.pop %v867
        %v869 = vadd.f32 %v868, 1.0
        %v870 = vrcp.pop %v869
        %v871 = vmul.f32 1.0, %v870
        %v873 = vrot.slane %v551, 1
        %v875 = vadd.f32 %v873, %v722
        %v876 = vxor.u32 %v875, 2147483648
        %v877 = vmul.f32 %v876, 1.442695
        %v878 = vpow.pop %v877
        %v879 = vadd.f32 %v878, 1.0
        %v880 = vrcp.pop %v879
        %v881 = vmul.f32 1.0, %v880
        %v882 = vrot.slane %v551, 2
        %v884 = vadd.f32 %v882, %v791
        %v885 = vadd.f32 %v793, %v357
        %v886 = vmul.f32 %v871, %v885
        %v887 = vadd.f32 %v884, %v886
        %v888 = vtanh.pop %v887
        %v889 = vsub.f32 1.0, %v881
        %v890 = vmul.f32 %v889, %v888
        %v891 = vmul.f32 %v881, %v550
        %v892 = vadd.f32 %v890, %v891
        %893 = vmatprep.subr.mxu0 0.0
        %894 = vmatpush1.msra.mxu0 %v549
        %895 = vmatprep.subr.mxu0 0.0
        %896 = vmatpush1.msra.mxu0 %v548
        %897 = vmatprep.subr.mxu0 0.0
        %898 = vmatpush1.msra.mxu0 %v547
        %899 = vmatprep.subr.mxu0 0.0
        %900 = vmatpush1.msra.mxu0 %v546
        %901 = vmatprep.subr.mxu0 0.0
        %902 = vmatpush1.msra.mxu0 %v545
        %903 = vmatprep.subr.mxu0 0.0
        %904 = vmatpush1.msra.mxu0 %v544
        %905 = vmatprep.subr.mxu0 0.0
        %906 = vmatpush1.msra.mxu0 %v543
        %907 = vmatprep.subr.mxu0 0.0
        %908 = vmatpush1.msra.mxu0 %v542
        %909 = vmatprep.subr.mxu0 0.0
        %910 = vmatpush1.msra.mxu0 %v541
        %911 = vmatprep.subr.mxu0 0.0
        %912 = vmatpush1.msra.mxu0 %v540
        %913 = vmatprep.subr.mxu0 0.0
        %914 = vmatpush1.msra.mxu0 %v539
        %915 = vmatprep.subr.mxu0 0.0
        %916 = vmatpush1.msra.mxu0 %v538
        %917 = vmatprep.subr.mxu0 0.0
        %918 = vmatpush1.msra.mxu0 %v537
        %919 = vmatprep.subr.mxu0 0.0
        %920 = vmatpush1.msra.mxu0 %v536
        %921 = vmatprep.subr.mxu0 0.0
        %922 = vmatpush1.msra.mxu0 %v535
        %923 = vmatprep.subr.mxu0 0.0
        %924 = vmatpush1.msra.mxu0 %v534
        %925 = vmatprep.subr.mxu0 0.0
        %926 = vmatpush2.msra.mxu0 0.0
        %927 = vmatprep.subr.mxu0 0.0
        %928 = vmatpush2.msra.mxu0 0.0
        %929 = vmatprep.subr.mxu0 0.0
        %930 = vmatpush2.msra.mxu0 0.0
        %931 = vmatprep.subr.mxu0 0.0
        %932 = vmatpush2.msra.mxu0 0.0
        %933 = vmatprep.subr.mxu0 0.0
        %934 = vmatpush2.msra.mxu0 0.0
        %935 = vmatprep.subr.mxu0 0.0
        %936 = vmatpush2.msra.mxu0 0.0
        %937 = vmatprep.subr.mxu0 0.0
        %938 = vmatpush2.msra.mxu0 0.0
        %939 = vmatprep.subr.mxu0 0.0
        %940 = vmatpush2.msra.mxu0 0.0
        %941 = vmatprep.subr.mxu0 0.0
        %942 = vmatpush2.msra.mxu0 0.0
        %943 = vmatprep.subr.mxu0 0.0
        %944 = vmatpush2.msra.mxu0 0.0
        %945 = vmatprep.subr.mxu0 0.0
        %946 = vmatpush2.msra.mxu0 0.0
        %947 = vmatprep.subr.mxu0 0.0
        %948 = vmatpush2.msra.mxu0 0.0
        %949 = vmatprep.subr.mxu0 0.0
        %950 = vmatpush2.msra.mxu0 0.0
        %951 = vmatprep.subr.mxu0 0.0
        %952 = vmatpush2.msra.mxu0 0.0
        %953 = vmatprep.subr.mxu0 0.0
        %954 = vmatpush2.msra.mxu0 0.0
        %955 = vmatprep.subr.mxu0 0.0
        %956 = vmatpush2.msra.mxu0 0.0
        %957 = vmatprep.mubr.f32.mxu0 0.0
        %958 = vmatmul.mubr.f32.gmra.mxu0 %v892
        %v959 = vpop.f32.mrf.mxu0
        %v960 = vadd.f32 %v862, %v959
        %v961 = vpop.f32.mrf.mxu0
        %962 = vdwg.mxu0
        %v963 = vlaneseq
        %v964 = vshrl.u32 %v963, 7
        %v965 = vsub.s32 3, %v964
        %v966 = vrot.slane %v551, %v965
        %v968 = vadd.f32 %v960, %v966
        %969 = vst [vmem:[%s338] sm:$0x1] %v968
        %970 = vst [vmem:[%s344] sm:$0x1] %v892
        %s971 = sand.u32 %s197, 1
        %s972 = scalar_lea.sflag [#allocation4], %s971
        %s973 = sand.u32 %s197, 1
        %s974 = scalar_lea.vmem [#allocation5], %s973
        %s975 = sand.u32 %s223, 1
        %s976 = scalar_lea.sflag [#allocation7], %s975
        %s977 = sand.u32 %s223, 1
        %s978 = scalar_lea.vmem [#allocation6], %s977
        // Predicated region
        $region53: #{_decoder_decode_impl.1} parent=47 // pred_check
          %p979 = pneg %p207
        $region54: #{_decoder_decode_impl.1} parent=47 // pred_check_branch
          %981 = sbr.rel (%p979) target = $region56
        $region55: #{_decoder_decode_impl.1} parent=47 // pred_region
          %s983 = ssub.s32 16, 16
          %984 = vsyncadd %s972, %s983
          %s985 = smul.addr %s27, 16
          %s986 = scalar_lea.hbm %s7, %s985
          %s988 = sshll.u32 %s974, 4
          %s989 = int_to_ptr.vmem [resolvable:$true] %s988
          %991 = dma.vmem_to_hbm [thread:$0]  %s989, 16, %s986, %s972
        $region56: #{_decoder_decode_impl.1} parent=47 // pred_fallthru
          _
        // Predicated region
        $region57: #{_decoder_decode_impl.1} parent=47 // pred_check
          %p992 = pneg %p233
        $region58: #{_decoder_decode_impl.1} parent=47 // pred_check_branch
          %994 = sbr.rel (%p992) target = $region60
        $region59: #{_decoder_decode_impl.1} parent=47 // pred_region
          %s996 = ssub.s32 16, 16
          %997 = vsyncadd %s976, %s996
          %s998 = smul.addr %s27, 16
          %s999 = scalar_lea.hbm %s8, %s998
          %s1001 = sshll.u32 %s978, 4
          %s1002 = int_to_ptr.vmem [resolvable:$true] %s1001
          %1004 = dma.vmem_to_hbm [thread:$0]  %s1002, 16, %s999, %s976
        $region60: #{_decoder_decode_impl.1} parent=47 // pred_fallthru
          _
      $region48: #{_decoder_decode_impl.1} parent=5 // pred_fallthru
        _
      %p1005 = scmp.le.s32.totalorder 2, %s22
      // Predicated region
      $region61: #{_decoder_decode_impl.1} parent=5 // pred_check
        %p1006 = pneg %p1005
      $region62: #{_decoder_decode_impl.1} parent=5 // pred_check_branch
        %1008 = sbr.rel (%p1006) target = $region64
      $region63: #{_decoder_decode_impl.1} parent=5 // pred_region
        %s1009 = ssub.s32 %s22, 2
        // Predicated region
        $region65: #{_decoder_decode_impl.1} parent=63 // pred_check
          %p1010 = pneg %p213
        $region66: #{_decoder_decode_impl.1} parent=63 // pred_check_branch
          %1012 = sbr.rel (%p1010) target = $region68
        $region67: #{_decoder_decode_impl.1} parent=63 // pred_region
          %s1013 = sand.u32 %s198, 1
          %s1014 = scalar_lea.sflag [#allocation4], %s1013
          %s1015 = sand.u32 %s198, 1
          %s1016 = scalar_lea.vmem [#allocation5], %s1015
          %1017 = dma.done %s1014, 16
        $region68: #{_decoder_decode_impl.1} parent=63 // pred_fallthru
          _
        // Predicated region
        $region69: #{_decoder_decode_impl.1} parent=63 // pred_check
          %p1018 = pneg %p239
        $region70: #{_decoder_decode_impl.1} parent=63 // pred_check_branch
          %1020 = sbr.rel (%p1018) target = $region72
        $region71: #{_decoder_decode_impl.1} parent=63 // pred_region
          %s1021 = sand.u32 %s224, 1
          %s1022 = scalar_lea.sflag [#allocation7], %s1021
          %s1023 = sand.u32 %s224, 1
          %s1024 = scalar_lea.vmem [#allocation6], %s1023
          %1025 = dma.done %s1022, 16
        $region72: #{_decoder_decode_impl.1} parent=63 // pred_fallthru
          _
      $region64: #{_decoder_decode_impl.1} parent=5 // pred_fallthru
        _
    $region6: #{_decoder_decode_impl.1} parent=1 // loop_footer
      %s26 = sadd.s32 1, %s22
    $region7: #{_decoder_decode_impl.1} parent=1 // loop_footer_branch
      %21 = sbr.rel target = $region3
    $region8: #{_decoder_decode_impl.1} parent=1 // loop_exit
      _
    %1026 = vsyncpa [#allocation3], 1
    %s1027 = scalar_lea.sflag [#allocation3], 1
    %1028 = vsyncpa %s1027, 1
    %1029 = vsyncpa [#allocation4], 1
    %s1030 = scalar_lea.sflag [#allocation4], 1
    %1031 = vsyncpa %s1030, 1
    %1032 = vsyncpa [#allocation7], 1
    %s1033 = scalar_lea.sflag [#allocation7], 1
    %1034 = vsyncpa %s1033, 1

</llo_original>
